<compile_context>
chip_gen: v6e
topology: v6e:2x2x1
jax: 0.10.0
libtpu: 0.0.40
codegen_flags: <defaults>
</compile_context>

<pallas_src>
import jax
import jax.numpy as jnp
from jax.experimental import pallas as pl
from jax.experimental.pallas import tpu as pltpu


def _pe_add_kernel(x_ref, pe_ref, o_ref):
    # x_ref / o_ref: (tS, tB, D)    pe_ref: (tS, D)
    # Broadcast pe across the batch (sublane) axis of the x block.
    o_ref[...] = (x_ref[...] + pe_ref[...][:, None, :]).astype(o_ref.dtype)


def _choose_tiles(S, B, D, itemsize, target_bytes=2 * 1024 * 1024):
    """Pick (tS, tB) so one x block is ~target_bytes (memory-bound sweet spot).

    TPU constraint: the last two dims of a block_shape must be multiples of
    (8, 128) or equal the full array dims.  D is always kept full.  tB is
    either the full B or a multiple of 8.  tS (also the sublane dim of the pe
    block) is either the full S or a multiple of 8.
    """
    row_bytes = D * itemsize
    if B * row_bytes <= target_bytes or B < 8:
        tB = B
    else:
        tB = max(8, (target_bytes // row_bytes) // 8 * 8)
        tB = min(tB, (B // 8) * 8)
    s_rows = max(1, target_bytes // (tB * row_bytes))
    if s_rows >= S or S <= 8:
        tS = S
    else:
        tS = min(max(8, (s_rows // 8) * 8), S)
    return tS, tB


def positional_encoding_forward(x, h_pe, w_pe, first_pe, H, W,
                                *, s_block=None, b_block=None):
    """x: (S, B, D) with S <= H*W + 1; params follow the torch module shapes."""
    S, B, D = x.shape

    # --- glue (plain JAX, O(S*D)): build the COMBINED positional table ------
    # h_pe.repeat(1, W, 1).reshape(H*W, 1, -1): each h-row repeated W times.
    h_full = jnp.reshape(jnp.tile(h_pe, (1, W, 1)), (H * W, D))
    # w_pe.repeat(H, 1, 1).reshape(H*W, 1, -1): the W rows tiled H times.
    w_full = jnp.reshape(jnp.tile(w_pe, (H, 1, 1)), (H * W, D))
    first = jnp.reshape(first_pe, (1, D))
    pe = (jnp.concatenate([first, h_full], axis=0)[:S]
          + jnp.concatenate([first, w_full], axis=0)[:S])   # (S, D)
    pe = pe.astype(x.dtype)

    # --- tile choice ---------------------------------------------------------
    tS, tB = _choose_tiles(S, B, D, x.dtype.itemsize)
    if s_block is not None:
        tS = s_block
    if b_block is not None:
        tB = b_block
    grid = (pl.cdiv(S, tS), pl.cdiv(B, tB))   # batch tiles innermost

    # --- Pallas hot path: tiled, pipelined broadcast-add ---------------------
    out = pl.pallas_call(
        _pe_add_kernel,
        out_shape=jax.ShapeDtypeStruct((S, B, D), x.dtype),
        grid_spec=pltpu.PrefetchScalarGridSpec(
            num_scalar_prefetch=0,
            grid=grid,
            in_specs=[
                pl.BlockSpec((tS, tB, D), lambda s, b: (s, b, 0)),
                # pe ignores the inner batch axis -> same block index across
                # consecutive steps -> DMA'd once per S tile, stays resident.
                pl.BlockSpec((tS, D), lambda s, b: (s, 0)),
            ],
            out_specs=pl.BlockSpec((tS, tB, D), lambda s, b: (s, b, 0)),
        ),
        compiler_params=pltpu.CompilerParams(
            # S tiles are independent -> shard across v7x's two TensorCores.
            # Batch axis kept "arbitrary" (sequential) so the pe block stays
            # resident between consecutive grid steps.
            dimension_semantics=("parallel", "arbitrary"),
        ),
    )(x, pe)
    return out


def _torch_style_reference(x, h_pe, w_pe, first_pe, H, W):
    S, B, D = x.shape
    h_full = jnp.reshape(jnp.tile(h_pe, (1, W, 1)), (H * W, 1, D))
    h_full = jnp.concatenate([jnp.reshape(first_pe, (1, 1, D)), h_full], axis=0)
    w_full = jnp.reshape(jnp.tile(w_pe, (H, 1, 1)), (H * W, 1, D))
    w_full = jnp.concatenate([jnp.reshape(first_pe, (1, 1, D)), w_full], axis=0)
    return x + h_full[:S] + w_full[:S]


if __name__ == "__main__":
    key = jax.random.PRNGKey(0)

    # ---- Case 1: small config, ragged grid forced (s_block=8, S=17) --------
    d_model, H, W = 32, 4, 4
    S = H * W + 1          # cls token + H*W patches
    B = 2
    k1, k2, k3, k4, k5 = jax.random.split(key, 5)
    h_pe = jax.random.normal(k1, (H, 1, d_model), dtype=jnp.float32)
    w_pe = jax.random.normal(k2, (W, 1, d_model), dtype=jnp.float32)
    first_pe = jax.random.normal(k3, (1, 1, d_model), dtype=jnp.float32)
    x = jax.random.normal(k4, (S, B, d_model), dtype=jnp.float32)

    out = positional_encoding_forward(x, h_pe, w_pe, first_pe, H, W, s_block=8)
    out = jax.block_until_ready(out)
    ref = _torch_style_reference(x, h_pe, w_pe, first_pe, H, W)
    assert out.shape == (S, B, d_model)
    assert jnp.allclose(out, ref, atol=1e-5, rtol=1e-5)

    # ---- Case 2: lane-dense shape (D=128, B=8), auto tile selection --------
    d_model2, H2, W2 = 128, 4, 4
    S2 = H2 * W2 + 1
    B2 = 8
    k6, k7, k8, k9 = jax.random.split(k5, 4)
    h_pe2 = jax.random.normal(k6, (H2, 1, d_model2), dtype=jnp.float32)
    w_pe2 = jax.random.normal(k7, (W2, 1, d_model2), dtype=jnp.float32)
    first_pe2 = jax.random.normal(k8, (1, 1, d_model2), dtype=jnp.float32)
    x2 = jax.random.normal(k9, (S2, B2, d_model2), dtype=jnp.float32)

    out2 = positional_encoding_forward(x2, h_pe2, w_pe2, first_pe2, H2, W2)
    out2 = jax.block_until_ready(out2)
    ref2 = _torch_style_reference(x2, h_pe2, w_pe2, first_pe2, H2, W2)
    assert out2.shape == (S2, B2, d_model2)
    assert jnp.allclose(out2, ref2, atol=1e-5, rtol=1e-5)

    print("KERNEL_OK")
</pallas_src>

<mosaic_0001>
module attributes {stable_mosaic.version = 11 : i64} {
  func.func @_pe_add_kernel(%arg0: i32, %arg1: i32, %arg2: memref<8x2x32xf32, #tpu.memory_space<vmem>>, %arg3: memref<8x32xf32, #tpu.memory_space<vmem>>, %arg4: memref<8x2x32xf32, #tpu.memory_space<vmem>>) attributes {dimension_semantics = [#tpu.dimension_semantics<parallel>, #tpu.dimension_semantics<arbitrary>], iteration_bounds = array<i64: 3, 1>, scalar_prefetch = 0 : i64, scratch_operands = 0 : i64, tpu.core_type = #tpu.core_type<tc>, window_params = [{transform_indices = @transform_0, window_bounds = array<i64: 8, 2, 32>}, {transform_indices = @transform_1, window_bounds = array<i64: 8, 32>}, {transform_indices = @transform_2, window_bounds = array<i64: 8, 2, 32>}]} {
    %c0 = arith.constant 0 : index
    %c0_0 = arith.constant 0 : index
    %c0_1 = arith.constant 0 : index
    %0 = vector.load %arg2[%c0, %c0_0, %c0_1] : memref<8x2x32xf32, #tpu.memory_space<vmem>>, vector<8x2x32xf32>
    %c0_2 = arith.constant 0 : index
    %c0_3 = arith.constant 0 : index
    %1 = vector.load %arg3[%c0_2, %c0_3] : memref<8x32xf32, #tpu.memory_space<vmem>>, vector<8x32xf32>
    %2 = vector.shape_cast %1 : vector<8x32xf32> to vector<8x1x32xf32>
    %3 = vector.broadcast %2 : vector<8x1x32xf32> to vector<8x2x32xf32>
    %4 = arith.addf %0, %3 : vector<8x2x32xf32>
    %c0_4 = arith.constant 0 : index
    %c0_5 = arith.constant 0 : index
    %c0_6 = arith.constant 0 : index
    %5 = vector.load %arg4[%c0_4, %c0_5, %c0_6] : memref<8x2x32xf32, #tpu.memory_space<vmem>>, vector<8x2x32xf32>
    tpu.vector_store %arg4[%c0_4, %c0_5, %c0_6], %4 {strides = array<i32>} : memref<8x2x32xf32, #tpu.memory_space<vmem>>, vector<8x2x32xf32>,
    return
  }
  func.func @transform_0(%arg0: i32, %arg1: i32) -> (i32, i32, i32) {
    %c0_i32 = arith.constant 0 : i32
    %c0_i32_0 = arith.constant 0 : i32
    return %arg0, %arg1, %c0_i32 : i32, i32, i32
  }
  func.func @transform_1(%arg0: i32, %arg1: i32) -> (i32, i32) {
    %c0_i32 = arith.constant 0 : i32
    %c0_i32_0 = arith.constant 0 : i32
    return %arg0, %c0_i32 : i32, i32
  }
  func.func @transform_2(%arg0: i32, %arg1: i32) -> (i32, i32, i32) {
    %c0_i32 = arith.constant 0 : i32
    %c0_i32_0 = arith.constant 0 : i32
    return %arg0, %arg1, %c0_i32 : i32, i32, i32
  }
}

</mosaic_0001>

<llo_original>
// kernel: tpu_custom_call.1
$region0: #{tpu_custom_call.1}
  #allocation0 [shape = 'u32[]', space=smem, size = 0x4, offset = 0x4, fixed_abs, tag = 'smem constant byte address 0x4 - core index']
  #allocation1 [shape = 'u32[144,128]{1,0:T(1,128)}', space=vmem, size = 0x12000, scoped, tag = 'internal scratch']
  %s0 = inlined_call_operand.hbm [shape: f32[17,2,32], index: 0, kind: input, shape index: {}]
  %s1 = inlined_call_operand.hbm [shape: f32[17,32], index: 1, kind: input, shape index: {}]
  %s2 = inlined_call_operand.hbm [shape: f32[17,2,32], index: 2, kind: output, shape index: {}]
  %s3 = sld [smem:[#allocation0]]
  $region49: #{tpu_custom_call.1} parent=0
    _
  %s5 = ssub.s32 1, %s3
  %s6 = scalar_select 0, %s5, %s3
  $region1: #{tpu_custom_call.1} parent=0
    #allocation2 [shape = 'u8[16384]{0}', space=vmem, size = 0x4000, scoped, tag = 'input window, operand 0']
    #allocation3 [shape = 's32[2]{0}', space=sflag, size = 0x8, scoped, tag = 'scoped memory for tpu_custom_call.1']
    #allocation4 [shape = 's32[2]{0}', space=sflag, size = 0x8, scoped, tag = 'scoped memory for tpu_custom_call.1']
    #allocation5 [shape = 'u8[8192]{0}', space=vmem, size = 0x2000, scoped, tag = 'input window, operand 1']
    #allocation6 [shape = 's32[2]{0}', space=sflag, size = 0x8, scoped, tag = 'scoped memory for tpu_custom_call.1']
    #allocation7 [shape = 'u8[16384]{0}', space=vmem, size = 0x4000, scoped, tag = 'output window, operand 0']
    %7 = vsyncpa [#allocation3], 0
    %s8 = scalar_lea.sflag [#allocation3], 1
    %9 = vsyncpa %s8, 0
    %10 = vsyncpa [#allocation6], 0
    %s11 = scalar_lea.sflag [#allocation6], 1
    %12 = vsyncpa %s11, 0
    %13 = vsyncpa [#allocation4], 0
    %s14 = scalar_lea.sflag [#allocation4], 1
    %15 = vsyncpa %s14, 0
    loop: start=0, step=1, limit=5
    $region2: #{tpu_custom_call.1} parent=1 // loop_pre_header
      _
    $region3: #{tpu_custom_call.1} parent=1 // loop_header
      %s17 = sphi 0, %s21
      %p18 = scmp.ge.s32.totalorder %s17, 5
      %s24 = sphi 0, %s36
      %s25 = sphi 0, %s32
      %s26 = sphi 0, %s24
      %s27 = sphi 0, %s25
      %s28 = sphi 0, %s26
      %s29 = sphi 0, %s27
      %s41 = sphi 0, %s43
      %s44 = sphi 0, %s41
      %s45 = sphi 0, %s44
      %s61 = sphi 0, %s45
      %s67 = sphi 0, %s69
      %s70 = sphi 0, %s67
      %s71 = sphi 0, %s70
      %s87 = sphi 0, %s71
      %s95 = sphi 0, %s97
      %s98 = sphi 0, %s95
      %s99 = sphi 0, %s98
      %s115 = sphi 0, %s99
    $region4: #{tpu_custom_call.1} parent=1 // loop_header_branch
      %20 = sbr.rel (%p18) target = $region8
    $region5: #{tpu_custom_call.1} parent=1 // loop_body
      %s22 = ssub.s32 %s17, 1
      %s23 = ssub.s32 %s17, 2
      %s30 = sadd.s32 1, %s25
      %p31 = scmp.ge.s32.totalorder %s30, 1
      %s32 = scalar_select %p31, 0, %s30
      %s33 = sadd.s32 1, %s24
      %s34 = scalar_select %p31, %s33, %s24
      %p35 = scmp.ge.s32.totalorder %s34, 3
      %s36 = scalar_select %p35, 0, %s34
      %s37 = ssub.s32 %s24, %s36
      %s38 = ssub.s32 %s25, %s32
      %s39 = sor.u32 %s37, %s38
      %p40 = scmp.eq.s32.totalorder %s39, 0
      %s42 = sadd.s32 %s41, 1
      %s43 = scalar_select %p40, %s41, %s42
      %p46 = pneg %p40
      %p47 = scmp.eq.s32.totalorder %s17, 2
      %p48 = por %p46, %p47
      %p49 = scmp.ne.s32.totalorder %s41, %s44
      %p50 = scmp.eq.s32.totalorder %s17, 0
      %p51 = por %p49, %p50
      %p52 = scmp.ne.s32.totalorder %s41, %s44
      %p53 = scmp.eq.s32.totalorder %s22, 2
      %p54 = por %p52, %p53
      %p55 = scmp.ne.s32.totalorder %s44, %s45
      %p56 = scmp.eq.s32.totalorder %s22, 0
      %p57 = por %p55, %p56
      %p58 = scmp.ne.s32.totalorder %s44, %s45
      %p59 = scmp.eq.s32.totalorder %s23, 2
      %p60 = por %p58, %p59
      %p62 = scmp.ne.s32.totalorder %s45, %s61
      %p63 = scmp.eq.s32.totalorder %s23, 0
      %p64 = por %p62, %p63
      %s65 = ssub.s32 %s24, %s36
      %p66 = scmp.eq.s32.totalorder %s65, 0
      %s68 = sadd.s32 %s67, 1
      %s69 = scalar_select %p66, %s67, %s68
      %p72 = pneg %p66
      %p73 = scmp.eq.s32.totalorder %s17, 2
      %p74 = por %p72, %p73
      %p75 = scmp.ne.s32.totalorder %s67, %s70
      %p76 = scmp.eq.s32.totalorder %s17, 0
      %p77 = por %p75, %p76
      %p78 = scmp.ne.s32.totalorder %s67, %s70
      %p79 = scmp.eq.s32.totalorder %s22, 2
      %p80 = por %p78, %p79
      %p81 = scmp.ne.s32.totalorder %s70, %s71
      %p82 = scmp.eq.s32.totalorder %s22, 0
      %p83 = por %p81, %p82
      %p84 = scmp.ne.s32.totalorder %s70, %s71
      %p85 = scmp.eq.s32.totalorder %s23, 2
      %p86 = por %p84, %p85
      %p88 = scmp.ne.s32.totalorder %s71, %s87
      %p89 = scmp.eq.s32.totalorder %s23, 0
      %p90 = por %p88, %p89
      %s91 = ssub.s32 %s24, %s36
      %s92 = ssub.s32 %s25, %s32
      %s93 = sor.u32 %s91, %s92
      %p94 = scmp.eq.s32.totalorder %s93, 0
      %s96 = sadd.s32 %s95, 1
      %s97 = scalar_select %p94, %s95, %s96
      %p100 = pneg %p94
      %p101 = scmp.eq.s32.totalorder %s17, 2
      %p102 = por %p100, %p101
      %p103 = scmp.ne.s32.totalorder %s95, %s98
      %p104 = scmp.eq.s32.totalorder %s17, 0
      %p105 = por %p103, %p104
      %p106 = scmp.ne.s32.totalorder %s95, %s98
      %p107 = scmp.eq.s32.totalorder %s22, 2
      %p108 = por %p106, %p107
      %p109 = scmp.ne.s32.totalorder %s98, %s99
      %p110 = scmp.eq.s32.totalorder %s22, 0
      %p111 = por %p109, %p110
      %p112 = scmp.ne.s32.totalorder %s98, %s99
      %p113 = scmp.eq.s32.totalorder %s23, 2
      %p114 = por %p112, %p113
      %p116 = scmp.ne.s32.totalorder %s99, %s115
      %p117 = scmp.eq.s32.totalorder %s23, 0
      %p118 = por %p116, %p117
      %p119 = scmp.le.s32.totalorder 1, %s17
      %p120 = scmp.lt.s32.totalorder %s17, 4
      %p121 = pnand %p119, %p120
      %p122 = pneg %p121
      // Predicated region
      $region9: #{tpu_custom_call.1} parent=5 // pred_check
        _
      $region10: #{tpu_custom_call.1} parent=5 // pred_check_branch
        %124 = sbr.rel (%p121) target = $region12
      $region11: #{tpu_custom_call.1} parent=5 // pred_region
        %s125 = ssub.s32 %s17, 1
      $region12: #{tpu_custom_call.1} parent=5 // pred_fallthru
        _
      %p126 = scmp.lt.s32.totalorder %s17, 3
      // Predicated region
      $region13: #{tpu_custom_call.1} parent=5 // pred_check
        %p127 = pneg %p126
      $region14: #{tpu_custom_call.1} parent=5 // pred_check_branch
        %129 = sbr.rel (%p127) target = $region16
      $region15: #{tpu_custom_call.1} parent=5 // pred_region
        // Predicated region
        $region17: #{tpu_custom_call.1} parent=15 // pred_check
          %p130 = pneg %p51
        $region18: #{tpu_custom_call.1} parent=15 // pred_check_branch
          %132 = sbr.rel (%p130) target = $region20
        $region19: #{tpu_custom_call.1} parent=15 // pred_region
          %s133 = sand.u32 %s41, 1
          %s134 = scalar_lea.sflag [#allocation3], %s133
          %s135 = sand.u32 %s41, 1
          %s136 = smul.addr %s135, 16
          %s137 = scalar_lea.vmem [#allocation2], %s136
          %s138 = smul.u32 8, %s24
          %s139 = ssub.s32 17, %s138
          %p140 = scmp.lt.s32.totalorder %s139, 8
          %s141 = scalar_select %p140, %s139, 8
          %s142 = smul.u32 32, %s141
          %s144 = ssub.s32 256, %s142
          %145 = vsyncadd %s134, %s144
          %p146 = scmp.ne.s32.totalorder 0, %s142
          %s147 = sadd.s32 %s25, %s138
          %s148 = smul.addr %s147, 32
          %s149 = scalar_lea.hbm %s0, %s148
          %s150 = smul.u32 2, %s141
          %s151 = sshll.u32 %s137, 4
          %s152 = int_to_ptr.vmem [resolvable:$true] %s151
          %s153 = sshll.u32 %s150, 4
          %157 = dma.hbm_to_vmem [thread:$0]  (%p146), %s149, %s153, %s152, %s134, 32, 32, 2
        $region20: #{tpu_custom_call.1} parent=15 // pred_fallthru
          _
        // Predicated region
        $region21: #{tpu_custom_call.1} parent=15 // pred_check
          %p158 = pneg %p77
        $region22: #{tpu_custom_call.1} parent=15 // pred_check_branch
          %160 = sbr.rel (%p158) target = $region24
        $region23: #{tpu_custom_call.1} parent=15 // pred_region
          %s161 = sand.u32 %s67, 1
          %s162 = scalar_lea.sflag [#allocation6], %s161
          %s163 = sand.u32 %s67, 1
          %s164 = smul.addr %s163, 8
          %s165 = scalar_lea.vmem [#allocation5], %s164
          %s167 = ssub.s32 128, 128
          %168 = vsyncadd %s162, %s167
          %s169 = smul.addr %s24, 128
          %s170 = scalar_lea.hbm %s1, %s169
          %s172 = sshll.u32 %s165, 4
          %s173 = int_to_ptr.vmem [resolvable:$true] %s172
          %175 = dma.hbm_to_vmem [thread:$0]  %s170, 128, %s173, %s162
        $region24: #{tpu_custom_call.1} parent=15 // pred_fallthru
          _
      $region16: #{tpu_custom_call.1} parent=5 // pred_fallthru
        _
      %p176 = scmp.le.s32.totalorder 1, %s17
      %p177 = scmp.lt.s32.totalorder %s17, 4
      %p178 = pnand %p176, %p177
      %p179 = pneg %p178
      // Predicated region
      $region25: #{tpu_custom_call.1} parent=5 // pred_check
        _
      $region26: #{tpu_custom_call.1} parent=5 // pred_check_branch
        %181 = sbr.rel (%p178) target = $region28
      $region27: #{tpu_custom_call.1} parent=5 // pred_region
        %s182 = ssub.s32 %s17, 1
        %s183 = sand.u32 %s44, 1
        %s184 = scalar_lea.sflag [#allocation3], %s183
        %s185 = sand.u32 %s44, 1
        %s186 = smul.addr %s185, 16
        %s187 = scalar_lea.vmem [#allocation2], %s186
        // Predicated region
        $region29: #{tpu_custom_call.1} parent=27 // pred_check
          %p188 = pneg %p57
        $region30: #{tpu_custom_call.1} parent=27 // pred_check_branch
          %190 = sbr.rel (%p188) target = $region32
        $region31: #{tpu_custom_call.1} parent=27 // pred_region
          %191 = dma.done %s184, 256
        $region32: #{tpu_custom_call.1} parent=27 // pred_fallthru
          _
        %s192 = sand.u32 %s70, 1
        %s193 = scalar_lea.sflag [#allocation6], %s192
        %s194 = sand.u32 %s70, 1
        %s195 = smul.addr %s194, 8
        %s196 = scalar_lea.vmem [#allocation5], %s195
        // Predicated region
        $region33: #{tpu_custom_call.1} parent=27 // pred_check
          %p197 = pneg %p83
        $region34: #{tpu_custom_call.1} parent=27 // pred_check_branch
          %199 = sbr.rel (%p197) target = $region36
        $region35: #{tpu_custom_call.1} parent=27 // pred_region
          %200 = dma.done %s193, 128
        $region36: #{tpu_custom_call.1} parent=27 // pred_fallthru
          _
        %s201 = sand.u32 %s44, 1
        %s202 = scalar_lea.sflag [#allocation3], %s201
        %s203 = sand.u32 %s44, 1
        %s204 = smul.addr %s203, 16
        %s205 = scalar_lea.vmem [#allocation2], %s204
        %p206 = pneg %p57
        %p207 = pneg %p54
        %s208 = sand.u32 %s70, 1
        %s209 = scalar_lea.sflag [#allocation6], %s208
        %s210 = sand.u32 %s70, 1
        %s211 = smul.addr %s210, 8
        %s212 = scalar_lea.vmem [#allocation5], %s211
        %p213 = pneg %p83
        %p214 = pneg %p80
        %p215 = pneg %p111
        %p216 = pneg %p108
        %s217 = sand.u32 %s98, 1
        %s218 = scalar_lea.sflag [#allocation4], %s217
        %s219 = sand.u32 %s98, 1
        %s220 = smul.addr %s219, 16
        %s221 = scalar_lea.vmem [#allocation7], %s220
        %s222 = smul.u32 8, %s26
        %s223 = ssub.s32 17, %s222
        %p224 = scmp.lt.s32.totalorder %s223, 8
        %s225 = scalar_select %p224, %s223, 8
        %s226 = smul.u32 32, %s225
        %s227 = smul.u32 8, %s26
        %s228 = ssub.s32 17, %s227
        %p229 = scmp.lt.s32.totalorder %s228, 8
        %s230 = scalar_select %p229, %s228, 8
        %s231 = smul.u32 32, %s230
        %v232 = vld [vmem:[%s187] sm:$0x3]
        %v233 = vld [vmem:[%s187 + $0x2] sm:$0x3]
        %v234 = vld [vmem:[%s187 + $0x4] sm:$0x3]
        %v235 = vld [vmem:[%s187 + $0x6] sm:$0x3]
        %v236 = vld [vmem:[%s187 + $0x8] sm:$0x3]
        %v237 = vld [vmem:[%s187 + $0xa] sm:$0x3]
        %v238 = vld [vmem:[%s187 + $0xc] sm:$0x3]
        %v239 = vld [vmem:[%s187 + $0xe] sm:$0x3]
        %v240 = vld [vmem:[%s196] sm:$0xff]
        %v242 = vcombine.high %v240, %v240
        %v244 = vunpack.c.l.s4 1966171168
        %v245 = vunpack.c.0.s8 %v244
        %v246 = vlaneseq
        %v247 = vshrl.u32 %v246, 7
        %v248 = vsub.s32 %v245, %v247
        %v249 = vrot.slane %v240, %v248
        %v251 = vunpack.c.l.s4 1966171168
        %v252 = vunpack.c.0.s8 %v251
        %v253 = vlaneseq
        %v254 = vshrl.u32 %v253, 7
        %v255 = vsub.s32 %v252, %v254
        %v256 = vrot.slane %v242, %v255
        %v257 = vcombine.high %v249, %v249
        %v258 = vcombine.high %v256, %v256
        %v260 = vunpack.c.l.s4 1966171168
        %v261 = vunpack.c.0.s8 %v260
        %v262 = vlaneseq
        %v263 = vshrl.u32 %v262, 7
        %v264 = vsub.s32 %v261, %v263
        %v265 = vrot.slane %v249, %v264
        %v267 = vunpack.c.l.s4 1966171168
        %v268 = vunpack.c.0.s8 %v267
        %v269 = vlaneseq
        %v270 = vshrl.u32 %v269, 7
        %v271 = vsub.s32 %v268, %v270
        %v272 = vrot.slane %v256, %v271
        %v274 = vunpack.c.l.s4 1966171168
        %v275 = vunpack.c.0.s8 %v274
        %v276 = vlaneseq
        %v277 = vshrl.u32 %v276, 7
        %v278 = vsub.s32 %v275, %v277
        %v279 = vrot.slane %v257, %v278
        %v281 = vunpack.c.l.s4 1966171168
        %v282 = vunpack.c.0.s8 %v281
        %v283 = vlaneseq
        %v284 = vshrl.u32 %v283, 7
        %v285 = vsub.s32 %v282, %v284
        %v286 = vrot.slane %v258, %v285
        %v287 = vcombine.high %v265, %v265
        %v288 = vcombine.high %v272, %v272
        %v289 = vcombine.high %v279, %v279
        %v290 = vcombine.high %v286, %v286
        %v291 = vlaneseq
        %v292 = vshrl.u32 %v291, 7
        %v293 = vsub.s32 0, %v292
        %v294 = vrot.slane %v265, %v293
        %v295 = vlaneseq
        %v296 = vshrl.u32 %v295, 7
        %v297 = vsub.s32 0, %v296
        %v298 = vrot.slane %v279, %v297
        %v299 = vlaneseq
        %v300 = vshrl.u32 %v299, 7
        %v301 = vsub.s32 0, %v300
        %v302 = vrot.slane %v287, %v301
        %v303 = vlaneseq
        %v304 = vshrl.u32 %v303, 7
        %v305 = vsub.s32 0, %v304
        %v306 = vrot.slane %v289, %v305
        %v307 = vlaneseq
        %v308 = vshrl.u32 %v307, 7
        %v309 = vsub.s32 0, %v308
        %v310 = vrot.slane %v272, %v309
        %v311 = vlaneseq
        %v312 = vshrl.u32 %v311, 7
        %v313 = vsub.s32 0, %v312
        %v314 = vrot.slane %v286, %v313
        %v315 = vlaneseq
        %v316 = vshrl.u32 %v315, 7
        %v317 = vsub.s32 0, %v316
        %v318 = vrot.slane %v288, %v317
        %v319 = vlaneseq
        %v320 = vshrl.u32 %v319, 7
        %v321 = vsub.s32 0, %v320
        %v322 = vrot.slane %v290, %v321
        %v331 = vadd.f32 %v232, %v294
        %v332 = vadd.f32 %v233, %v298
        %v333 = vadd.f32 %v234, %v302
        %v334 = vadd.f32 %v235, %v306
        %v335 = vadd.f32 %v236, %v310
        %v336 = vadd.f32 %v237, %v314
        %v337 = vadd.f32 %v238, %v318
        %v338 = vadd.f32 %v239, %v322
        %vm339 = vcmask 254976
        %340 = vst.msk [vmem:[%s221] sm:$0x3] %vm339, %v331
        %341 = vst.msk [vmem:[%s221 + $0x2] sm:$0x3] %vm339, %v332
        %342 = vst.msk [vmem:[%s221 + $0x4] sm:$0x3] %vm339, %v333
        %343 = vst.msk [vmem:[%s221 + $0x6] sm:$0x3] %vm339, %v334
        %344 = vst.msk [vmem:[%s221 + $0x8] sm:$0x3] %vm339, %v335
        %345 = vst.msk [vmem:[%s221 + $0xa] sm:$0x3] %vm339, %v336
        %346 = vst.msk [vmem:[%s221 + $0xc] sm:$0x3] %vm339, %v337
        %347 = vst.msk [vmem:[%s221 + $0xe] sm:$0x3] %vm339, %v338
        %s348 = sand.u32 %s98, 1
        %s349 = scalar_lea.sflag [#allocation4], %s348
        %s350 = sand.u32 %s98, 1
        %s351 = smul.addr %s350, 16
        %s352 = scalar_lea.vmem [#allocation7], %s351
        // Predicated region
        $region37: #{tpu_custom_call.1} parent=27 // pred_check
          %p353 = pneg %p108
        $region38: #{tpu_custom_call.1} parent=27 // pred_check_branch
          %355 = sbr.rel (%p353) target = $region40
        $region39: #{tpu_custom_call.1} parent=27 // pred_region
          %s356 = smul.u32 8, %s26
          %s357 = ssub.s32 17, %s356
          %p358 = scmp.lt.s32.totalorder %s357, 8
          %s359 = scalar_select %p358, %s357, 8
          %s360 = smul.u32 32, %s359
          %s362 = ssub.s32 256, %s360
          %363 = vsyncadd %s349, %s362
          %p364 = scmp.ne.s32.totalorder 0, %s360
          %s365 = sadd.s32 %s27, %s356
          %s366 = smul.addr %s365, 32
          %s367 = scalar_lea.hbm %s2, %s366
          %s368 = smul.u32 2, %s359
          %s369 = sshll.u32 %s352, 4
          %s370 = int_to_ptr.vmem [resolvable:$true] %s369
          %s371 = sshll.u32 %s368, 4
          %375 = dma.vmem_to_hbm [thread:$0]  (%p364), %s370, %s371, %s367, %s349, 32, 32, 2
        $region40: #{tpu_custom_call.1} parent=27 // pred_fallthru
          _
      $region28: #{tpu_custom_call.1} parent=5 // pred_fallthru
        _
      %p376 = scmp.le.s32.totalorder 2, %s17
      // Predicated region
      $region41: #{tpu_custom_call.1} parent=5 // pred_check
        %p377 = pneg %p376
      $region42: #{tpu_custom_call.1} parent=5 // pred_check_branch
        %379 = sbr.rel (%p377) target = $region44
      $region43: #{tpu_custom_call.1} parent=5 // pred_region
        %s380 = ssub.s32 %s17, 2
        // Predicated region
        $region45: #{tpu_custom_call.1} parent=43 // pred_check
          %p381 = pneg %p114
        $region46: #{tpu_custom_call.1} parent=43 // pred_check_branch
          %383 = sbr.rel (%p381) target = $region48
        $region47: #{tpu_custom_call.1} parent=43 // pred_region
          %s384 = sand.u32 %s99, 1
          %s385 = scalar_lea.sflag [#allocation4], %s384
          %s386 = sand.u32 %s99, 1
          %s387 = smul.addr %s386, 16
          %s388 = scalar_lea.vmem [#allocation7], %s387
          %389 = dma.done %s385, 256
        $region48: #{tpu_custom_call.1} parent=43 // pred_fallthru
          _
      $region44: #{tpu_custom_call.1} parent=5 // pred_fallthru
        _
    $region6: #{tpu_custom_call.1} parent=1 // loop_footer
      %s21 = sadd.s32 1, %s17
    $region7: #{tpu_custom_call.1} parent=1 // loop_footer_branch
      %16 = sbr.rel target = $region3
    $region8: #{tpu_custom_call.1} parent=1 // loop_exit
      _
    %390 = vsyncpa [#allocation3], 1
    %s391 = scalar_lea.sflag [#allocation3], 1
    %392 = vsyncpa %s391, 1
    %393 = vsyncpa [#allocation6], 1
    %s394 = scalar_lea.sflag [#allocation6], 1
    %395 = vsyncpa %s394, 1
    %396 = vsyncpa [#allocation4], 1
    %s397 = scalar_lea.sflag [#allocation4], 1
    %398 = vsyncpa %s397, 1

</llo_original>
